<compile_context>
chip_gen: v7x
topology: tpu7x:2x2x1
jax: 0.10.0
libtpu: 0.0.40
codegen_flags: <defaults>
</compile_context>

<pallas_src>
import jax
import jax.numpy as jnp
from jax.experimental import pallas as pl
from jax.experimental.pallas import tpu as pltpu


def _round_up(x, m):
    return (x + m - 1) // m * m


def fusion_self_attention_kernel(c_ref, mask_ref, w1_ref, b1_ref, w2_ref, out_ref):
    Bt, S, E = c_ref.shape
    H = w1_ref.shape[1]

    c = c_ref[...]                                    # (Bt, S, E)  storage dtype
    mask = mask_ref[...].astype(jnp.float32)          # (Bt, S)

    # --- fuser: Linear(E,H) -> tanh -> Linear(H,1, no bias) -----------------------
    # S is sublane-aligned for c's dtype (wrapper guarantees it), so this reshape is
    # a layout-free view and the first matmul runs as one big 2-D MXU pass.
    c2 = c.reshape(Bt * S, E)
    h = jnp.tanh(
        jnp.dot(c2, w1_ref[...], preferred_element_type=jnp.float32) + b1_ref[...]
    )                                                 # (Bt*S, H) f32
    # TODO(synk): on v6e/v7x a bf16 tanh would relieve the single EUP if it ever
    # binds at 3.2 TB/s; kept f32 (exact) since the kernel is HBM-bound on c.
    # Second linear has N=1 -> VPU multiply + lane reduce instead of an MXU pass;
    # keep the logits lane-dense as (Bt, S).
    a = jnp.sum(h.reshape(Bt, S, H) * w2_ref[...], axis=-1)       # (Bt, S) f32

    # --- masked, max-stabilised softmax over the sequence (lane) axis -------------
    neg = jnp.float32(-1e30)
    m = jnp.max(jnp.where(mask > 0.0, a, neg), axis=-1, keepdims=True)   # masked max
    m = jnp.where(m <= neg * 0.5, jnp.float32(0.0), m)   # finite for all-masked rows
    p = jnp.exp(a - m) * mask                         # (Bt, S)
    denom = jnp.sum(p, axis=-1, keepdims=True)        # (Bt, 1)
    # EUP reciprocal instead of a VALU divide; the epsilon makes fully-masked /
    # ragged-tile rows produce 0 where the PyTorch reference would produce NaN.
    alpha = p * pl.reciprocal(jnp.maximum(denom, jnp.float32(1e-30)), approx=True)

    # --- weighted sum over the sequence: VPU multiply + sublane (XLU) reduce ------
    # alpha kept in f32; c is widened in-register only (no extra HBM traffic).
    pooled = jnp.sum(alpha[:, :, None] * c.astype(jnp.float32), axis=1)   # (Bt, E)
    out_ref[...] = pooled.astype(out_ref.dtype)


def fusion_self_attention(c, mask, w1, b1, w2, *, batch_tile=None):
    """c: (B,S,E), mask: (B,S), w1: (E,H), b1: (H,), w2: (H,1)  ->  (B,E) f32.

    c (and w1) are consumed in c's dtype -- pass bf16 from the producer to halve the
    dominant HBM stream; accumulation is always f32.  No wrapper-side copy of c is
    made unless S is not sublane-aligned for c's dtype.
    """
    B, S, E = c.shape
    H = w1.shape[1]
    store_dtype = jnp.dtype(c.dtype)
    itemsize = store_dtype.itemsize
    sub_c = {4: 8, 2: 16, 1: 32}.get(itemsize, 8)

    # Pad S only when the in-kernel (Bt*S, E) view would need a layout change.
    S_pad = _round_up(S, sub_c)
    if S_pad != S:
        # TODO(synk): this costs one extra HBM pass over c; feed sublane-aligned S
        # (multiple of 8 for f32, 16 for bf16) to take the zero-copy fast path.
        c_in = jnp.pad(c, ((0, 0), (0, S_pad - S), (0, 0)))
        mask_in = jnp.pad(mask, ((0, 0), (0, S_pad - S)))      # padded rows: mask==0
    else:
        c_in, mask_in = c, mask

    # ---- generation-aware VMEM budget (v5e/v6e: 128 MiB physical, v7x: 64 MiB) ----
    try:
        vmem_phys = int(pltpu.get_tpu_info().vmem_capacity_bytes)
    except Exception:
        vmem_phys = 64 * 1024 * 1024                   # conservative (v7x)
    vmem_limit = min(int(vmem_phys * 0.7), 96 * 1024 * 1024)

    # Per-batch-row VMEM footprint: lane/sublane padded, f32 intermediates included.
    E_pad = _round_up(E, 128)
    H_pad = _round_up(H, 128)
    S32 = _round_up(S_pad, 8)
    per_row = (2 * S_pad * E_pad * itemsize            # c block (double-buffered)
               + 2 * S32 * H_pad * 4                   # h and h*w2 f32 temporaries
               + 2 * S32 * E_pad * 4                   # f32 c / alpha*c pooling temps
               + 8 * _round_up(S_pad, 128) * 4)        # logits / p / alpha / mask rows
    headroom = 4 * 1024 * 1024                         # resident weights + slack

    if batch_tile is None:
        batch_tile = max(1, (vmem_limit - headroom) // per_row)
    Bt = max(1, min(B, int(batch_tile)))
    # Guarantee a multi-step grid when the batch allows it (pipelining overlap and
    # both TensorCores on v7x), but never below the 8-row sublane tile.
    if B > 8:
        min_steps = 4
        Bt = min(Bt, max(8, pl.cdiv(B, min_steps)))
    # 2-D mask / output blocks: second-minor dim must be a multiple of 8 unless it
    # spans the whole batch.
    if Bt < B:
        Bt = max(8, (Bt // 8) * 8)
        Bt = min(Bt, B)
    # Make sure the scoped limit actually covers the chosen tile.
    vmem_limit = max(vmem_limit, min(int(vmem_phys * 0.9), Bt * per_row + headroom))

    w1_r = w1.astype(store_dtype)                      # tiny; uniform MXU dtype
    b1_row = b1.reshape(1, H).astype(jnp.float32)
    w2_row = w2.reshape(1, H).astype(jnp.float32)      # (H,1) -> lane-dense row

    grid = (pl.cdiv(B, Bt),)

    cost = pl.CostEstimate(
        flops=2 * B * S_pad * E * H + 2 * B * S_pad * H + 2 * B * S_pad * E,
        transcendentals=B * S_pad * (H + 1),           # tanh on h + exp on the logits
        bytes_accessed=(c_in.size * itemsize
                        + mask_in.size * jnp.dtype(mask_in.dtype).itemsize
                        + w1_r.size * itemsize + (2 * H + B * E) * 4),
    )

    out = pl.pallas_call(
        fusion_self_attention_kernel,
        out_shape=jax.ShapeDtypeStruct((B, E), jnp.float32),
        grid=grid,
        in_specs=[
            pl.BlockSpec((Bt, S_pad, E), lambda i: (i, 0, 0)),   # c: batch-tiled
            pl.BlockSpec((Bt, S_pad), lambda i: (i, 0)),         # mask: batch-tiled
            pl.BlockSpec((E, H), lambda i: (0, 0)),              # w1: resident
            pl.BlockSpec((1, H), lambda i: (0, 0)),              # b1 row: resident
            pl.BlockSpec((1, H), lambda i: (0, 0)),              # w2 row: resident
        ],
        out_specs=pl.BlockSpec((Bt, E), lambda i: (i, 0)),
        compiler_params=pltpu.CompilerParams(
            dimension_semantics=("parallel",),         # shard batch tiles across TCs
            vmem_limit_bytes=int(vmem_limit),
        ),
        cost_estimate=cost,
    )(c_in, mask_in, w1_r, b1_row, w2_row)
    return out


def reference(c, mask, w1, b1, w2):
    h = jnp.tanh(jnp.einsum("bse,eh->bsh", c, w1) + b1)
    a = jnp.einsum("bsh,ho->bso", h, w2)               # (B, S, 1)
    alpha = jnp.exp(a) * mask[..., None]
    alpha = alpha / alpha.sum(axis=1, keepdims=True)
    return (alpha * c).sum(axis=1)


if __name__ == "__main__":
    B, S, E, H = 32, 16, 32, 32                        # embed_dim = hidden_dim = 32

    key = jax.random.PRNGKey(0)
    k_c, k_m, k_w1, k_b1, k_w2 = jax.random.split(key, 5)

    c = jax.random.normal(k_c, (B, S, E), dtype=jnp.float32)
    mask = (jax.random.uniform(k_m, (B, S)) > 0.3).astype(jnp.float32)
    mask = mask.at[:, 0].set(1.0)                      # no all-masked rows (ref NaNs)

    # nn.Linear-style deterministic init
    w1 = jax.random.uniform(k_w1, (E, H), jnp.float32, -1.0, 1.0) / jnp.sqrt(E)
    b1 = jax.random.uniform(k_b1, (H,), jnp.float32, -1.0, 1.0) / jnp.sqrt(E)
    w2 = jax.random.uniform(k_w2, (H, 1), jnp.float32, -1.0, 1.0) / jnp.sqrt(H)

    ref = reference(c, mask, w1, b1, w2)

    # f32 path; batch_tile=8 -> 4-step grid (exercises pipelining + parallel axis).
    out = jax.block_until_ready(
        fusion_self_attention(c, mask, w1, b1, w2, batch_tile=8))
    assert out.shape == (B, E)
    # approx (EUP) reciprocal in the normalisation -> slightly loosened tolerance
    assert jnp.allclose(out, ref, atol=2e-3, rtol=2e-3), "f32 kernel mismatch vs reference"

    # bf16 c straight from the "producer" (no wrapper-side cast); auto tile sizing.
    c_bf16 = c.astype(jnp.bfloat16)
    out_bf16 = jax.block_until_ready(fusion_self_attention(c_bf16, mask, w1, b1, w2))
    assert out_bf16.shape == (B, E)
    assert bool(jnp.all(jnp.isfinite(out_bf16)))
    assert jnp.allclose(out_bf16, ref, atol=1e-1, rtol=1e-1), "bf16 kernel mismatch vs reference"

    print("KERNEL_OK")
</pallas_src>

<mosaic_0001>
module attributes {stable_mosaic.version = 11 : i64} {
  func.func @fusion_self_attention_kernel(%arg0: i32, %arg1: memref<8x16x32xf32, #tpu.memory_space<vmem>>, %arg2: memref<8x16xf32, #tpu.memory_space<vmem>>, %arg3: memref<32x32xf32, #tpu.memory_space<vmem>>, %arg4: memref<1x32xf32, #tpu.memory_space<vmem>>, %arg5: memref<1x32xf32, #tpu.memory_space<vmem>>, %arg6: memref<8x32xf32, #tpu.memory_space<vmem>>) attributes {dimension_semantics = [#tpu.dimension_semantics<parallel>], iteration_bounds = array<i64: 4>, scalar_prefetch = 0 : i64, scratch_operands = 0 : i64, tpu.core_type = #tpu.core_type<tc>, window_params = [{transform_indices = @transform_0, window_bounds = array<i64: 8, 16, 32>}, {transform_indices = @transform_1, window_bounds = array<i64: 8, 16>}, {pipeline_mode = #tpu.pipeline_mode<synchronous>, transform_indices = @transform_2, window_bounds = array<i64: 32, 32>}, {pipeline_mode = #tpu.pipeline_mode<synchronous>, transform_indices = @transform_3, window_bounds = array<i64: 1, 32>}, {pipeline_mode = #tpu.pipeline_mode<synchronous>, transform_indices = @transform_4, window_bounds = array<i64: 1, 32>}, {transform_indices = @transform_5, window_bounds = array<i64: 8, 32>}]} {
    %c0 = arith.constant 0 : index
    %c0_0 = arith.constant 0 : index
    %c0_1 = arith.constant 0 : index
    %0 = vector.load %arg1[%c0, %c0_0, %c0_1] : memref<8x16x32xf32, #tpu.memory_space<vmem>>, vector<8x16x32xf32>
    %c0_2 = arith.constant 0 : index
    %c0_3 = arith.constant 0 : index
    %1 = vector.load %arg2[%c0_2, %c0_3] : memref<8x16xf32, #tpu.memory_space<vmem>>, vector<8x16xf32>
    %2 = vector.shape_cast %0 : vector<8x16x32xf32> to vector<128x32xf32>
    %c0_4 = arith.constant 0 : index
    %c0_5 = arith.constant 0 : index
    %3 = vector.load %arg3[%c0_4, %c0_5] : memref<32x32xf32, #tpu.memory_space<vmem>>, vector<32x32xf32>
    %cst = arith.constant dense<0.000000e+00> : vector<128x32xf32>
    %4 = tpu.matmul %2, %3, %cst {dimension_numbers = #tpu.dot_dimension_numbers<[1], [0], [0], [1], [0, 0, 1, 1], [], []>} : vector<128x32xf32>, vector<32x32xf32>, vector<128x32xf32> -> vector<128x32xf32>
    %c0_6 = arith.constant 0 : index
    %c0_7 = arith.constant 0 : index
    %5 = vector.load %arg4[%c0_6, %c0_7] : memref<1x32xf32, #tpu.memory_space<vmem>>, vector<1x32xf32>
    %6 = vector.broadcast %5 : vector<1x32xf32> to vector<128x32xf32>
    %7 = arith.addf %4, %6 : vector<128x32xf32>
    %8 = math.tanh %7 : vector<128x32xf32>
    %9 = vector.shape_cast %8 : vector<128x32xf32> to vector<8x16x32xf32>
    %c0_8 = arith.constant 0 : index
    %c0_9 = arith.constant 0 : index
    %10 = vector.load %arg5[%c0_8, %c0_9] : memref<1x32xf32, #tpu.memory_space<vmem>>, vector<1x32xf32>
    %11 = vector.shape_cast %10 : vector<1x32xf32> to vector<1x1x32xf32>
    %12 = vector.broadcast %11 : vector<1x1x32xf32> to vector<8x16x32xf32>
    %13 = arith.mulf %9, %12 : vector<8x16x32xf32>
    %cst_10 = arith.constant dense<0.000000e+00> : vector<8x16xf32>
    %14 = vector.multi_reduction <add>, %13, %cst_10 [2] : vector<8x16x32xf32> to vector<8x16xf32>
    %cst_11 = arith.constant 0.000000e+00 : f32
    %15 = vector.broadcast %cst_11 : f32 to vector<8x16xf32>
    %16 = arith.cmpf ogt, %1, %15 : vector<8x16xf32>
    %cst_12 = arith.constant -1.000000e+30 : f32
    %17 = vector.broadcast %cst_12 : f32 to vector<8x16xf32>
    %18 = arith.select %16, %14, %17 : vector<8x16xi1>, vector<8x16xf32>
    %cst_13 = arith.constant dense<0xFF800000> : vector<8xf32>
    %19 = vector.multi_reduction <maximumf>, %18, %cst_13 [1] : vector<8x16xf32> to vector<8xf32>
    %20 = vector.shape_cast %19 : vector<8xf32> to vector<8x1xf32>
    %cst_14 = arith.constant -1.000000e+30 : f32
    %cst_15 = arith.constant 5.000000e-01 : f32
    %21 = arith.mulf %cst_14, %cst_15 : f32
    %22 = vector.broadcast %21 : f32 to vector<8x1xf32>
    %23 = arith.cmpf ole, %20, %22 : vector<8x1xf32>
    %cst_16 = arith.constant 0.000000e+00 : f32
    %24 = vector.broadcast %cst_16 : f32 to vector<8x1xf32>
    %25 = arith.select %23, %24, %20 : vector<8x1xi1>, vector<8x1xf32>
    %26 = vector.broadcast %25 : vector<8x1xf32> to vector<8x16xf32>
    %27 = arith.subf %14, %26 : vector<8x16xf32>
    %28 = math.exp %27 : vector<8x16xf32>
    %29 = arith.mulf %28, %1 : vector<8x16xf32>
    %cst_17 = arith.constant dense<0.000000e+00> : vector<8xf32>
    %30 = vector.multi_reduction <add>, %29, %cst_17 [1] : vector<8x16xf32> to vector<8xf32>
    %31 = vector.shape_cast %30 : vector<8xf32> to vector<8x1xf32>
    %cst_18 = arith.constant 1.000000e-30 : f32
    %32 = vector.broadcast %cst_18 : f32 to vector<8x1xf32>
    %33 = arith.maximumf %31, %32 : vector<8x1xf32>
    %34 = tpu.reciprocal %33 {approx = true} : vector<8x1xf32> -> vector<8x1xf32>
    %35 = vector.broadcast %34 : vector<8x1xf32> to vector<8x16xf32>
    %36 = arith.mulf %29, %35 : vector<8x16xf32>
    %37 = vector.shape_cast %36 : vector<8x16xf32> to vector<8x16x1xf32>
    %38 = vector.broadcast %37 : vector<8x16x1xf32> to vector<8x16x32xf32>
    %39 = arith.mulf %38, %0 : vector<8x16x32xf32>
    %cst_19 = arith.constant dense<0.000000e+00> : vector<8x32xf32>
    %40 = vector.multi_reduction <add>, %39, %cst_19 [1] : vector<8x16x32xf32> to vector<8x32xf32>
    %c0_20 = arith.constant 0 : index
    %c0_21 = arith.constant 0 : index
    %41 = vector.load %arg6[%c0_20, %c0_21] : memref<8x32xf32, #tpu.memory_space<vmem>>, vector<8x32xf32>
    tpu.vector_store %arg6[%c0_20, %c0_21], %40 {strides = array<i32>} : memref<8x32xf32, #tpu.memory_space<vmem>>, vector<8x32xf32>,
    return
  }
  func.func @transform_0(%arg0: i32) -> (i32, i32, i32) {
    %c0_i32 = arith.constant 0 : i32
    %c0_i32_0 = arith.constant 0 : i32
    %c0_i32_1 = arith.constant 0 : i32
    return %arg0, %c0_i32, %c0_i32_0 : i32, i32, i32
  }
  func.func @transform_1(%arg0: i32) -> (i32, i32) {
    %c0_i32 = arith.constant 0 : i32
    %c0_i32_0 = arith.constant 0 : i32
    return %arg0, %c0_i32 : i32, i32
  }
  func.func @transform_2(%arg0: i32) -> (i32, i32) {
    %c0_i32 = arith.constant 0 : i32
    %c0_i32_0 = arith.constant 0 : i32
    %c0_i32_1 = arith.constant 0 : i32
    return %c0_i32, %c0_i32_0 : i32, i32
  }
  func.func @transform_3(%arg0: i32) -> (i32, i32) {
    %c0_i32 = arith.constant 0 : i32
    %c0_i32_0 = arith.constant 0 : i32
    %c0_i32_1 = arith.constant 0 : i32
    return %c0_i32, %c0_i32_0 : i32, i32
  }
  func.func @transform_4(%arg0: i32) -> (i32, i32) {
    %c0_i32 = arith.constant 0 : i32
    %c0_i32_0 = arith.constant 0 : i32
    %c0_i32_1 = arith.constant 0 : i32
    return %c0_i32, %c0_i32_0 : i32, i32
  }
  func.func @transform_5(%arg0: i32) -> (i32, i32) {
    %c0_i32 = arith.constant 0 : i32
    %c0_i32_0 = arith.constant 0 : i32
    return %arg0, %c0_i32 : i32, i32
  }
}

</mosaic_0001>

<llo_original>
// kernel: tpu_custom_call.1
$region0: #{tpu_custom_call.1}
  #allocation0 [shape = 'u32[]', space=smem, size = 0x4, offset = 0x4, fixed_abs, tag = 'smem constant byte address 0x4 - core index']
  #allocation1 [shape = 'u32[144,128]{1,0:T(1,128)}', space=vmem, size = 0x12000, scoped, tag = 'internal scratch']
  %s0 = inlined_call_operand.hbm [shape: f32[32,16,32], index: 0, kind: input, shape index: {}]
  %s1 = inlined_call_operand.vmem [shape: f32[32,16], index: 1, kind: input, shape index: {}]
  %s2 = inlined_call_operand.vmem [shape: f32[32,32], index: 2, kind: input, shape index: {}]
  %s3 = inlined_call_operand.vmem [shape: f32[1,32], index: 3, kind: input, shape index: {}]
  %s4 = inlined_call_operand.vmem [shape: f32[1,32], index: 4, kind: input, shape index: {}]
  %s5 = inlined_call_operand.hbm [shape: f32[32,32], index: 5, kind: output, shape index: {}]
  %s6 = sld [smem:[#allocation0]]
  $region57: #{tpu_custom_call.1} parent=0
    _
  %s8 = ssub.s32 1, %s6
  %s9 = scalar_select 0, %s8, %s6
  $region1: #{tpu_custom_call.1} parent=0
    #allocation2 [shape = 'u8[131072]{0}', space=vmem, size = 0x20000, scoped, tag = 'input window, operand 0']
    #allocation3 [shape = 's32[2]{0}', space=sflag, size = 0x8, scoped, tag = 'scoped memory for tpu_custom_call.1']
    #allocation4 [shape = 's32[2]{0}', space=sflag, size = 0x8, scoped, tag = 'scoped memory for tpu_custom_call.1']
    #allocation5 [shape = 'u8[8192]{0}', space=vmem, size = 0x2000, scoped, tag = 'output window, operand 0']
    %10 = vsyncpa [#allocation3], 0
    %s11 = scalar_lea.sflag [#allocation3], 1
    %12 = vsyncpa %s11, 0
    %13 = vsyncpa [#allocation4], 0
    %s14 = scalar_lea.sflag [#allocation4], 1
    %15 = vsyncpa %s14, 0
    loop: start=0, step=1, limit=6
    $region2: #{tpu_custom_call.1} parent=1 // loop_pre_header
      _
    $region3: #{tpu_custom_call.1} parent=1 // loop_header
      %s17 = sphi 0, %s21
      %p18 = scmp.ge.s32.totalorder %s17, 6
      %s27 = sphi 0, %s29
      %s30 = sphi 0, %s27
      %s31 = sphi 0, %s30
      %s47 = sphi 0, %s31
      %s53 = sphi 0, %s55
      %s56 = sphi 0, %s53
      %s57 = sphi 0, %s56
      %s73 = sphi 0, %s57
      %s77 = sphi 0, %s77
      %s79 = sphi 0, %s77
      %s80 = sphi 0, %s79
      %s94 = sphi 0, %s80
      %s98 = sphi 0, %s98
      %s100 = sphi 0, %s98
      %s101 = sphi 0, %s100
      %s115 = sphi 0, %s101
      %s119 = sphi 0, %s119
      %s121 = sphi 0, %s119
      %s122 = sphi 0, %s121
      %s136 = sphi 0, %s122
      %s142 = sphi 0, %s144
      %s145 = sphi 0, %s142
      %s146 = sphi 0, %s145
      %s162 = sphi 0, %s146
    $region4: #{tpu_custom_call.1} parent=1 // loop_header_branch
      %20 = sbr.rel (%p18) target = $region8
    $region5: #{tpu_custom_call.1} parent=1 // loop_body
      %s22 = ssub.s32 %s17, 1
      %s23 = ssub.s32 %s17, 2
      %s24 = sadd.s32 %s17, 1
      %s25 = ssub.s32 %s17, %s24
      %p26 = scmp.eq.s32.totalorder %s25, 0
      %s28 = sadd.s32 %s27, 1
      %s29 = scalar_select %p26, %s27, %s28
      %p32 = pneg %p26
      %p33 = scmp.eq.s32.totalorder %s17, 3
      %p34 = por %p32, %p33
      %p35 = scmp.ne.s32.totalorder %s27, %s30
      %p36 = scmp.eq.s32.totalorder %s17, 0
      %p37 = por %p35, %p36
      %p38 = scmp.ne.s32.totalorder %s27, %s30
      %p39 = scmp.eq.s32.totalorder %s22, 3
      %p40 = por %p38, %p39
      %p41 = scmp.ne.s32.totalorder %s30, %s31
      %p42 = scmp.eq.s32.totalorder %s22, 0
      %p43 = por %p41, %p42
      %p44 = scmp.ne.s32.totalorder %s30, %s31
      %p45 = scmp.eq.s32.totalorder %s23, 3
      %p46 = por %p44, %p45
      %p48 = scmp.ne.s32.totalorder %s31, %s47
      %p49 = scmp.eq.s32.totalorder %s23, 0
      %p50 = por %p48, %p49
      %s51 = ssub.s32 %s17, %s24
      %p52 = scmp.eq.s32.totalorder %s51, 0
      %s54 = sadd.s32 %s53, 1
      %s55 = scalar_select %p52, %s53, %s54
      %p58 = pneg %p52
      %p59 = scmp.eq.s32.totalorder %s17, 3
      %p60 = por %p58, %p59
      %p61 = scmp.ne.s32.totalorder %s53, %s56
      %p62 = scmp.eq.s32.totalorder %s17, 0
      %p63 = por %p61, %p62
      %p64 = scmp.ne.s32.totalorder %s53, %s56
      %p65 = scmp.eq.s32.totalorder %s22, 3
      %p66 = por %p64, %p65
      %p67 = scmp.ne.s32.totalorder %s56, %s57
      %p68 = scmp.eq.s32.totalorder %s22, 0
      %p69 = por %p67, %p68
      %p70 = scmp.ne.s32.totalorder %s56, %s57
      %p71 = scmp.eq.s32.totalorder %s23, 3
      %p72 = por %p70, %p71
      %p74 = scmp.ne.s32.totalorder %s57, %s73
      %p75 = scmp.eq.s32.totalorder %s23, 0
      %p76 = por %p74, %p75
      %s78 = sadd.s32 %s77, 1
      %p81 = scmp.eq.s32.totalorder %s17, 3
      %p82 = scmp.ne.s32.totalorder %s77, %s79
      %p83 = scmp.eq.s32.totalorder %s17, 0
      %p84 = por %p82, %p83
      %p85 = scmp.ne.s32.totalorder %s77, %s79
      %p86 = scmp.eq.s32.totalorder %s22, 3
      %p87 = por %p85, %p86
      %p88 = scmp.ne.s32.totalorder %s79, %s80
      %p89 = scmp.eq.s32.totalorder %s22, 0
      %p90 = por %p88, %p89
      %p91 = scmp.ne.s32.totalorder %s79, %s80
      %p92 = scmp.eq.s32.totalorder %s23, 3
      %p93 = por %p91, %p92
      %p95 = scmp.ne.s32.totalorder %s80, %s94
      %p96 = scmp.eq.s32.totalorder %s23, 0
      %p97 = por %p95, %p96
      %s99 = sadd.s32 %s98, 1
      %p102 = scmp.eq.s32.totalorder %s17, 3
      %p103 = scmp.ne.s32.totalorder %s98, %s100
      %p104 = scmp.eq.s32.totalorder %s17, 0
      %p105 = por %p103, %p104
      %p106 = scmp.ne.s32.totalorder %s98, %s100
      %p107 = scmp.eq.s32.totalorder %s22, 3
      %p108 = por %p106, %p107
      %p109 = scmp.ne.s32.totalorder %s100, %s101
      %p110 = scmp.eq.s32.totalorder %s22, 0
      %p111 = por %p109, %p110
      %p112 = scmp.ne.s32.totalorder %s100, %s101
      %p113 = scmp.eq.s32.totalorder %s23, 3
      %p114 = por %p112, %p113
      %p116 = scmp.ne.s32.totalorder %s101, %s115
      %p117 = scmp.eq.s32.totalorder %s23, 0
      %p118 = por %p116, %p117
      %s120 = sadd.s32 %s119, 1
      %p123 = scmp.eq.s32.totalorder %s17, 3
      %p124 = scmp.ne.s32.totalorder %s119, %s121
      %p125 = scmp.eq.s32.totalorder %s17, 0
      %p126 = por %p124, %p125
      %p127 = scmp.ne.s32.totalorder %s119, %s121
      %p128 = scmp.eq.s32.totalorder %s22, 3
      %p129 = por %p127, %p128
      %p130 = scmp.ne.s32.totalorder %s121, %s122
      %p131 = scmp.eq.s32.totalorder %s22, 0
      %p132 = por %p130, %p131
      %p133 = scmp.ne.s32.totalorder %s121, %s122
      %p134 = scmp.eq.s32.totalorder %s23, 3
      %p135 = por %p133, %p134
      %p137 = scmp.ne.s32.totalorder %s122, %s136
      %p138 = scmp.eq.s32.totalorder %s23, 0
      %p139 = por %p137, %p138
      %s140 = ssub.s32 %s17, %s24
      %p141 = scmp.eq.s32.totalorder %s140, 0
      %s143 = sadd.s32 %s142, 1
      %s144 = scalar_select %p141, %s142, %s143
      %p147 = pneg %p141
      %p148 = scmp.eq.s32.totalorder %s17, 3
      %p149 = por %p147, %p148
      %p150 = scmp.ne.s32.totalorder %s142, %s145
      %p151 = scmp.eq.s32.totalorder %s17, 0
      %p152 = por %p150, %p151
      %p153 = scmp.ne.s32.totalorder %s142, %s145
      %p154 = scmp.eq.s32.totalorder %s22, 3
      %p155 = por %p153, %p154
      %p156 = scmp.ne.s32.totalorder %s145, %s146
      %p157 = scmp.eq.s32.totalorder %s22, 0
      %p158 = por %p156, %p157
      %p159 = scmp.ne.s32.totalorder %s145, %s146
      %p160 = scmp.eq.s32.totalorder %s23, 3
      %p161 = por %p159, %p160
      %p163 = scmp.ne.s32.totalorder %s146, %s162
      %p164 = scmp.eq.s32.totalorder %s23, 0
      %p165 = por %p163, %p164
      %p166 = scmp.le.s32.totalorder 1, %s17
      %p167 = scmp.lt.s32.totalorder %s17, 5
      %p168 = pnand %p166, %p167
      %p169 = pneg %p168
      // Predicated region
      $region9: #{tpu_custom_call.1} parent=5 // pred_check
        _
      $region10: #{tpu_custom_call.1} parent=5 // pred_check_branch
        %171 = sbr.rel (%p168) target = $region12
      $region11: #{tpu_custom_call.1} parent=5 // pred_region
        %s172 = ssub.s32 %s17, 1
        // Predicated region
        $region13: #{tpu_custom_call.1} parent=11 // pred_check
          %p173 = pneg %p90
        $region14: #{tpu_custom_call.1} parent=11 // pred_check_branch
          %175 = sbr.rel (%p173) target = $region16
        $region15: #{tpu_custom_call.1} parent=11 // pred_region
          _
        $region16: #{tpu_custom_call.1} parent=11 // pred_fallthru
          _
        // Predicated region
        $region17: #{tpu_custom_call.1} parent=11 // pred_check
          %p176 = pneg %p111
        $region18: #{tpu_custom_call.1} parent=11 // pred_check_branch
          %178 = sbr.rel (%p176) target = $region20
        $region19: #{tpu_custom_call.1} parent=11 // pred_region
          _
        $region20: #{tpu_custom_call.1} parent=11 // pred_fallthru
          _
        // Predicated region
        $region21: #{tpu_custom_call.1} parent=11 // pred_check
          %p179 = pneg %p132
        $region22: #{tpu_custom_call.1} parent=11 // pred_check_branch
          %181 = sbr.rel (%p179) target = $region24
        $region23: #{tpu_custom_call.1} parent=11 // pred_region
          _
        $region24: #{tpu_custom_call.1} parent=11 // pred_fallthru
          _
      $region12: #{tpu_custom_call.1} parent=5 // pred_fallthru
        _
      %p182 = scmp.lt.s32.totalorder %s17, 4
      // Predicated region
      $region25: #{tpu_custom_call.1} parent=5 // pred_check
        %p183 = pneg %p182
      $region26: #{tpu_custom_call.1} parent=5 // pred_check_branch
        %185 = sbr.rel (%p183) target = $region28
      $region27: #{tpu_custom_call.1} parent=5 // pred_region
        // Predicated region
        $region29: #{tpu_custom_call.1} parent=27 // pred_check
          %p186 = pneg %p37
        $region30: #{tpu_custom_call.1} parent=27 // pred_check_branch
          %188 = sbr.rel (%p186) target = $region32
        $region31: #{tpu_custom_call.1} parent=27 // pred_region
          %s189 = sand.u32 %s27, 1
          %s190 = scalar_lea.sflag [#allocation3], %s189
          %s191 = sand.u32 %s27, 1
          %s192 = smul.addr %s191, 128
          %s193 = scalar_lea.vmem [#allocation2], %s192
          %s194 = smul.u32 8, %s17
          %s196 = ssub.s32 2048, 2048
          %197 = vsyncadd %s190, %s196
          %s198 = smul.addr %s194, 2
          %s199 = smul.addr %s198, 128
          %s200 = scalar_lea.hbm %s0, %s199
          %s201 = sshll.u32 %s193, 4
          %s202 = int_to_ptr.vmem [resolvable:$true] %s201
          %207 = dma.hbm_to_vmem [thread:$0]  %s200, 2048, %s202, %s190, 128, 128, 8
        $region32: #{tpu_custom_call.1} parent=27 // pred_fallthru
          _
        // Predicated region
        $region33: #{tpu_custom_call.1} parent=27 // pred_check
          %p208 = pneg %p63
        $region34: #{tpu_custom_call.1} parent=27 // pred_check_branch
          %210 = sbr.rel (%p208) target = $region36
        $region35: #{tpu_custom_call.1} parent=27 // pred_region
          %p211 = scmp.lt.s32.totalorder %s17, 3
          %s212 = scalar_select %p211, %s17, 3
          %s213 = smul.addr %s212, 8
          %s214 = scalar_lea.vmem %s1, %s213
        $region36: #{tpu_custom_call.1} parent=27 // pred_fallthru
          _
      $region28: #{tpu_custom_call.1} parent=5 // pred_fallthru
        _
      %p215 = scmp.le.s32.totalorder 1, %s17
      %p216 = scmp.lt.s32.totalorder %s17, 5
      %p217 = pnand %p215, %p216
      %p218 = pneg %p217
      // Predicated region
      $region37: #{tpu_custom_call.1} parent=5 // pred_check
        _
      $region38: #{tpu_custom_call.1} parent=5 // pred_check_branch
        %220 = sbr.rel (%p217) target = $region40
      $region39: #{tpu_custom_call.1} parent=5 // pred_region
        %s221 = ssub.s32 %s17, 1
        %s222 = sand.u32 %s30, 1
        %s223 = scalar_lea.sflag [#allocation3], %s222
        %s224 = sand.u32 %s30, 1
        %s225 = smul.addr %s224, 128
        %s226 = scalar_lea.vmem [#allocation2], %s225
        // Predicated region
        $region41: #{tpu_custom_call.1} parent=39 // pred_check
          %p227 = pneg %p43
        $region42: #{tpu_custom_call.1} parent=39 // pred_check_branch
          %229 = sbr.rel (%p227) target = $region44
        $region43: #{tpu_custom_call.1} parent=39 // pred_region
          %230 = dma.done %s223, 2048
        $region44: #{tpu_custom_call.1} parent=39 // pred_fallthru
          _
        %s231 = sand.u32 %s30, 1
        %s232 = scalar_lea.sflag [#allocation3], %s231
        %s233 = sand.u32 %s30, 1
        %s234 = smul.addr %s233, 128
        %s235 = scalar_lea.vmem [#allocation2], %s234
        %p236 = pneg %p43
        %p237 = pneg %p40
        %p238 = scmp.lt.s32.totalorder %s22, 3
        %s239 = scalar_select %p238, %s22, 3
        %s240 = smul.addr %s239, 8
        %s241 = scalar_lea.vmem %s1, %s240
        %p242 = pneg %p69
        %p243 = pneg %p66
        %p244 = pneg %p90
        %p245 = pneg %p87
        %p246 = pneg %p111
        %p247 = pneg %p108
        %p248 = pneg %p132
        %p249 = pneg %p129
        %p250 = pneg %p158
        %p251 = pneg %p155
        %s252 = sand.u32 %s145, 1
        %s253 = scalar_lea.sflag [#allocation4], %s252
        %s254 = sand.u32 %s145, 1
        %s255 = smul.addr %s254, 8
        %s256 = scalar_lea.vmem [#allocation5], %s255
        %s257 = smul.u32 8, %s22
        %p258 = scmp.lt.s32.totalorder %s22, 3
        %s259 = scalar_select %p258, %s22, 3
        %s260 = smul.addr %s259, 8
        %s261 = scalar_lea.vmem %s1, %s260
        %v262 = vld [vmem:[%s226] sm:$0xff]
        %v263 = vld [vmem:[%s226 + $0x8] sm:$0xff]
        %v264 = vld [vmem:[%s226 + $0x10] sm:$0xff]
        %v265 = vld [vmem:[%s226 + $0x18] sm:$0xff]
        %v266 = vld [vmem:[%s226 + $0x20] sm:$0xff]
        %v267 = vld [vmem:[%s226 + $0x28] sm:$0xff]
        %v268 = vld [vmem:[%s226 + $0x30] sm:$0xff]
        %v269 = vld [vmem:[%s226 + $0x38] sm:$0xff]
        %v270 = vld [vmem:[%s226 + $0x40] sm:$0xff]
        %v271 = vld [vmem:[%s226 + $0x48] sm:$0xff]
        %v272 = vld [vmem:[%s226 + $0x50] sm:$0xff]
        %v273 = vld [vmem:[%s226 + $0x58] sm:$0xff]
        %v274 = vld [vmem:[%s226 + $0x60] sm:$0xff]
        %v275 = vld [vmem:[%s226 + $0x68] sm:$0xff]
        %v276 = vld [vmem:[%s226 + $0x70] sm:$0xff]
        %v277 = vld [vmem:[%s226 + $0x78] sm:$0xff]
        %v278 = vld [vmem:[%s261] sm:$0xff]
        %v279 = vld [vmem:[%s2] sm:$0xff]
        %v280 = vld [vmem:[%s2 + $0x8] sm:$0xff]
        %v281 = vld [vmem:[%s2 + $0x10] sm:$0xff]
        %v282 = vld [vmem:[%s2 + $0x18] sm:$0xff]
        %v283 = vld [vmem:[%s3] sm:$0x1]
        %v285 = vlaneseq
        %v286 = vshrl.u32 %v285, 7
        %v287 = vsub.s32 0, %v286
        %v288 = vrot.slane %v283, %v287
        %vm290 = vcmask 261120
        %v292 = vsel %vm290, %v262, 0
        %v295 = vsel %vm290, %v263, 0
        %v298 = vsel %vm290, %v264, 0
        %v301 = vsel %vm290, %v265, 0
        %v304 = vsel %vm290, %v266, 0
        %v307 = vsel %vm290, %v267, 0
        %v310 = vsel %vm290, %v268, 0
        %v313 = vsel %vm290, %v269, 0
        %v316 = vsel %vm290, %v270, 0
        %v319 = vsel %vm290, %v271, 0
        %v322 = vsel %vm290, %v272, 0
        %v325 = vsel %vm290, %v273, 0
        %v328 = vsel %vm290, %v274, 0
        %v331 = vsel %vm290, %v275, 0
        %v334 = vsel %vm290, %v276, 0
        %v337 = vsel %vm290, %v277, 0
        %339 = vmatprep.subr.mxu0 0.0
        %340 = vmatpush1.msra.mxu0 %v279
        %341 = vmatprep.subr.mxu0 0.0
        %342 = vmatpush1.msra.mxu0 %v280
        %343 = vmatprep.subr.mxu0 0.0
        %344 = vmatpush1.msra.mxu0 %v281
        %345 = vmatprep.subr.mxu0 0.0
        %346 = vmatpush1.msra.mxu0 %v282
        %347 = vmatprep.subr.mxu0 0.0
        %348 = vmatpush1.msra.mxu0 0.0
        %349 = vmatprep.subr.mxu0 0.0
        %350 = vmatpush1.msra.mxu0 0.0
        %351 = vmatprep.subr.mxu0 0.0
        %352 = vmatpush1.msra.mxu0 0.0
        %353 = vmatprep.subr.mxu0 0.0
        %354 = vmatpush1.msra.mxu0 0.0
        %355 = vmatprep.subr.mxu0 0.0
        %356 = vmatpush1.msra.mxu0 0.0
        %357 = vmatprep.subr.mxu0 0.0
        %358 = vmatpush1.msra.mxu0 0.0
        %359 = vmatprep.subr.mxu0 0.0
        %360 = vmatpush1.msra.mxu0 0.0
        %361 = vmatprep.subr.mxu0 0.0
        %362 = vmatpush1.msra.mxu0 0.0
        %363 = vmatprep.subr.mxu0 0.0
        %364 = vmatpush1.msra.mxu0 0.0
        %365 = vmatprep.subr.mxu0 0.0
        %366 = vmatpush1.msra.mxu0 0.0
        %367 = vmatprep.subr.mxu0 0.0
        %368 = vmatpush1.msra.mxu0 0.0
        %369 = vmatprep.subr.mxu0 0.0
        %370 = vmatpush1.msra.mxu0 0.0
        %371 = vmatprep.subr.mxu0 0.0
        %372 = vmatpush1.msra.mxu0 0.0
        %373 = vmatprep.subr.mxu0 0.0
        %374 = vmatpush1.msra.mxu0 0.0
        %375 = vmatprep.subr.mxu0 0.0
        %376 = vmatpush1.msra.mxu0 0.0
        %377 = vmatprep.subr.mxu0 0.0
        %378 = vmatpush1.msra.mxu0 0.0
        %379 = vmatprep.subr.mxu0 0.0
        %380 = vmatpush1.msra.mxu0 0.0
        %381 = vmatprep.subr.mxu0 0.0
        %382 = vmatpush1.msra.mxu0 0.0
        %383 = vmatprep.subr.mxu0 0.0
        %384 = vmatpush1.msra.mxu0 0.0
        %385 = vmatprep.subr.mxu0 0.0
        %386 = vmatpush1.msra.mxu0 0.0
        %387 = vmatprep.subr.mxu0 0.0
        %388 = vmatpush1.msra.mxu0 0.0
        %389 = vmatprep.subr.mxu0 0.0
        %390 = vmatpush1.msra.mxu0 0.0
        %391 = vmatprep.subr.mxu0 0.0
        %392 = vmatpush1.msra.mxu0 0.0
        %393 = vmatprep.subr.mxu0 0.0
        %394 = vmatpush1.msra.mxu0 0.0
        %395 = vmatprep.subr.mxu0 0.0
        %396 = vmatpush1.msra.mxu0 0.0
        %397 = vmatprep.subr.mxu0 0.0
        %398 = vmatpush1.msra.mxu0 0.0
        %399 = vmatprep.subr.mxu0 0.0
        %400 = vmatpush1.msra.mxu0 0.0
        %401 = vmatprep.subr.mxu0 0.0
        %402 = vmatpush1.msra.mxu0 0.0
        %403 = vmatprep.mubr.f32.mxu0 0.0
        %404 = vmatmul.mubr.f32.gmra.mrb[0].mxu0 %v292
        %v405 = vpop.f32.mrb[0].mxu0
        %v406 = vadd.f32 %v288, %v405
        %v407 = vpop.f32.mrb[0].mxu0
        %408 = vmatprep.mubr.f32.mxu0 0.0
        %409 = vmatmul.mubr.f32.gmra.mrb[0].mxu0 %v295
        %v410 = vpop.f32.mrb[0].mxu0
        %v411 = vadd.f32 %v288, %v410
        %v412 = vpop.f32.mrb[0].mxu0
        %413 = vmatprep.mubr.f32.mxu0 0.0
        %414 = vmatmul.mubr.f32.gmra.mrb[0].mxu0 %v298
        %v415 = vpop.f32.mrb[0].mxu0
        %v416 = vadd.f32 %v288, %v415
        %v417 = vpop.f32.mrb[0].mxu0
        %418 = vmatprep.mubr.f32.mxu0 0.0
        %419 = vmatmul.mubr.f32.gmra.mrb[0].mxu0 %v301
        %v420 = vpop.f32.mrb[0].mxu0
        %v421 = vadd.f32 %v288, %v420
        %v422 = vpop.f32.mrb[0].mxu0
        %423 = vmatprep.mubr.f32.mxu0 0.0
        %424 = vmatmul.mubr.f32.gmra.mrb[0].mxu0 %v304
        %v425 = vpop.f32.mrb[0].mxu0
        %v426 = vadd.f32 %v288, %v425
        %v427 = vpop.f32.mrb[0].mxu0
        %428 = vmatprep.mubr.f32.mxu0 0.0
        %429 = vmatmul.mubr.f32.gmra.mrb[0].mxu0 %v307
        %v430 = vpop.f32.mrb[0].mxu0
        %v431 = vadd.f32 %v288, %v430
        %v432 = vpop.f32.mrb[0].mxu0
        %433 = vmatprep.mubr.f32.mxu0 0.0
        %434 = vmatmul.mubr.f32.gmra.mrb[0].mxu0 %v310
        %v435 = vpop.f32.mrb[0].mxu0
        %v436 = vadd.f32 %v288, %v435
        %v437 = vpop.f32.mrb[0].mxu0
        %438 = vmatprep.mubr.f32.mxu0 0.0
        %439 = vmatmul.mubr.f32.gmra.mrb[0].mxu0 %v313
        %v440 = vpop.f32.mrb[0].mxu0
        %v441 = vadd.f32 %v288, %v440
        %v442 = vpop.f32.mrb[0].mxu0
        %443 = vmatprep.mubr.f32.mxu0 0.0
        %444 = vmatmul.mubr.f32.gmra.mrb[0].mxu0 %v316
        %v445 = vpop.f32.mrb[0].mxu0
        %v446 = vadd.f32 %v288, %v445
        %v447 = vpop.f32.mrb[0].mxu0
        %448 = vmatprep.mubr.f32.mxu0 0.0
        %449 = vmatmul.mubr.f32.gmra.mrb[0].mxu0 %v319
        %v450 = vpop.f32.mrb[0].mxu0
        %v451 = vadd.f32 %v288, %v450
        %v452 = vpop.f32.mrb[0].mxu0
        %453 = vmatprep.mubr.f32.mxu0 0.0
        %454 = vmatmul.mubr.f32.gmra.mrb[0].mxu0 %v322
        %v455 = vpop.f32.mrb[0].mxu0
        %v456 = vadd.f32 %v288, %v455
        %v457 = vpop.f32.mrb[0].mxu0
        %458 = vmatprep.mubr.f32.mxu0 0.0
        %459 = vmatmul.mubr.f32.gmra.mrb[0].mxu0 %v325
        %v460 = vpop.f32.mrb[0].mxu0
        %v461 = vadd.f32 %v288, %v460
        %v462 = vpop.f32.mrb[0].mxu0
        %463 = vmatprep.mubr.f32.mxu0 0.0
        %464 = vmatmul.mubr.f32.gmra.mrb[0].mxu0 %v328
        %v465 = vpop.f32.mrb[0].mxu0
        %v466 = vadd.f32 %v288, %v465
        %v467 = vpop.f32.mrb[0].mxu0
        %468 = vmatprep.mubr.f32.mxu0 0.0
        %469 = vmatmul.mubr.f32.gmra.mrb[0].mxu0 %v331
        %v470 = vpop.f32.mrb[0].mxu0
        %v471 = vadd.f32 %v288, %v470
        %v472 = vpop.f32.mrb[0].mxu0
        %473 = vmatprep.mubr.f32.mxu0 0.0
        %474 = vmatmul.mubr.f32.gmra.mrb[0].mxu0 %v334
        %v475 = vpop.f32.mrb[0].mxu0
        %v476 = vadd.f32 %v288, %v475
        %v477 = vpop.f32.mrb[0].mxu0
        %478 = vmatprep.mubr.f32.mxu0 0.0
        %479 = vmatmul.mubr.f32.gmra.mrb[0].mxu0 %v337
        %v480 = vpop.f32.mrb[0].mxu0
        %v481 = vadd.f32 %v288, %v480
        %v482 = vpop.f32.mrb[0].mxu0
        %483 = vdwg.mxu0
        %v484 = vtanh.pop %v406
        %v485 = vtanh.pop %v411
        %v486 = vtanh.pop %v416
        %v487 = vtanh.pop %v421
        %v488 = vtanh.pop %v426
        %v489 = vtanh.pop %v431
        %v490 = vtanh.pop %v436
        %v491 = vtanh.pop %v441
        %v492 = vtanh.pop %v446
        %v493 = vtanh.pop %v451
        %v494 = vtanh.pop %v456
        %v495 = vtanh.pop %v461
        %v496 = vtanh.pop %v466
        %v497 = vtanh.pop %v471
        %v498 = vtanh.pop %v476
        %v499 = vtanh.pop %v481
        %v500 = vld [vmem:[%s4] sm:$0x1]
        %v502 = vlaneseq
        %v503 = vshrl.u32 %v502, 7
        %v504 = vsub.s32 0, %v503
        %v505 = vrot.slane %v500, %v504
        %v507 = vmul.f32 %v484, %v505
        %v508 = vmul.f32 %v485, %v505
        %v509 = vmul.f32 %v486, %v505
        %v510 = vmul.f32 %v487, %v505
        %v511 = vmul.f32 %v488, %v505
        %v512 = vmul.f32 %v489, %v505
        %v513 = vmul.f32 %v490, %v505
        %v514 = vmul.f32 %v491, %v505
        %v515 = vmul.f32 %v492, %v505
        %v516 = vmul.f32 %v493, %v505
        %v517 = vmul.f32 %v494, %v505
        %v518 = vmul.f32 %v495, %v505
        %v519 = vmul.f32 %v496, %v505
        %v520 = vmul.f32 %v497, %v505
        %v521 = vmul.f32 %v498, %v505
        %v522 = vmul.f32 %v499, %v505
        %v523 = vsel %vm290, %v507, 0.0
        %524 = vadd.xlane.f32.xlu0 %v523
        %v525 = vpop.xlane.xlu0 %524
        %v526 = vsel %vm290, %v508, 0.0
        %527 = vadd.xlane.f32.xlu0 %v526
        %v528 = vpop.xlane.xlu0 %527
        %v529 = vsel %vm290, %v509, 0.0
        %530 = vadd.xlane.f32.xlu0 %v529
        %v531 = vpop.xlane.xlu0 %530
        %v532 = vsel %vm290, %v510, 0.0
        %533 = vadd.xlane.f32.xlu0 %v532
        %v534 = vpop.xlane.xlu0 %533
        %v535 = vsel %vm290, %v511, 0.0
        %536 = vadd.xlane.f32.xlu0 %v535
        %v537 = vpop.xlane.xlu0 %536
        %v538 = vsel %vm290, %v512, 0.0
        %539 = vadd.xlane.f32.xlu0 %v538
        %v540 = vpop.xlane.xlu0 %539
        %v541 = vsel %vm290, %v513, 0.0
        %542 = vadd.xlane.f32.xlu0 %v541
        %v543 = vpop.xlane.xlu0 %542
        %v544 = vsel %vm290, %v514, 0.0
        %545 = vadd.xlane.f32.xlu0 %v544
        %v546 = vpop.xlane.xlu0 %545
        %v547 = vsel %vm290, %v515, 0.0
        %548 = vadd.xlane.f32.xlu0 %v547
        %v549 = vpop.xlane.xlu0 %548
        %v550 = vsel %vm290, %v516, 0.0
        %551 = vadd.xlane.f32.xlu0 %v550
        %v552 = vpop.xlane.xlu0 %551
        %v553 = vsel %vm290, %v517, 0.0
        %554 = vadd.xlane.f32.xlu0 %v553
        %v555 = vpop.xlane.xlu0 %554
        %v556 = vsel %vm290, %v518, 0.0
        %557 = vadd.xlane.f32.xlu0 %v556
        %v558 = vpop.xlane.xlu0 %557
        %v559 = vsel %vm290, %v519, 0.0
        %560 = vadd.xlane.f32.xlu0 %v559
        %v561 = vpop.xlane.xlu0 %560
        %v562 = vsel %vm290, %v520, 0.0
        %563 = vadd.xlane.f32.xlu0 %v562
        %v564 = vpop.xlane.xlu0 %563
        %v565 = vsel %vm290, %v521, 0.0
        %566 = vadd.xlane.f32.xlu0 %v565
        %v567 = vpop.xlane.xlu0 %566
        %v568 = vsel %vm290, %v522, 0.0
        %569 = vadd.xlane.f32.xlu0 %v568
        %v570 = vpop.xlane.xlu0 %569
        %vm571 = vcmp.gt.f32.partialorder %v278, 0.0
        %v588 = vlaneseq
        %v589 = vand.u32 %v588, 127
        %v590 = vlaneseq
        %v591 = vshrl.u32 %v590, 7
        %v592 = vsub.s32 %v589, %v591
        %v593 = vrot.slane %v525, %v592
        %v594 = vadd.s32 %v589, 4294967288
        %v595 = vlaneseq
        %v596 = vshrl.u32 %v595, 7
        %v597 = vsub.s32 %v594, %v596
        %v598 = vrot.slane %v528, %v597
        %vm599 = vcmask 130112
        %v600 = vsel %vm599, %v598, %v593
        %v601 = vlaneseq
        %v602 = vshrl.u32 %v601, 7
        %v603 = vsub.s32 %v589, %v602
        %v604 = vrot.slane %v531, %v603
        %v605 = vlaneseq
        %v606 = vshrl.u32 %v605, 7
        %v607 = vsub.s32 %v594, %v606
        %v608 = vrot.slane %v534, %v607
        %v609 = vsel %vm599, %v608, %v604
        %v610 = vlaneseq
        %v611 = vshrl.u32 %v610, 7
        %v612 = vsub.s32 %v589, %v611
        %v613 = vrot.slane %v537, %v612
        %v614 = vlaneseq
        %v615 = vshrl.u32 %v614, 7
        %v616 = vsub.s32 %v594, %v615
        %v617 = vrot.slane %v540, %v616
        %v618 = vsel %vm599, %v617, %v613
        %v619 = vlaneseq
        %v620 = vshrl.u32 %v619, 7
        %v621 = vsub.s32 %v589, %v620
        %v622 = vrot.slane %v543, %v621
        %v623 = vlaneseq
        %v624 = vshrl.u32 %v623, 7
        %v625 = vsub.s32 %v594, %v624
        %v626 = vrot.slane %v546, %v625
        %v627 = vsel %vm599, %v626, %v622
        %v628 = vlaneseq
        %v629 = vshrl.u32 %v628, 7
        %v630 = vsub.s32 %v589, %v629
        %v631 = vrot.slane %v549, %v630
        %v632 = vlaneseq
        %v633 = vshrl.u32 %v632, 7
        %v634 = vsub.s32 %v594, %v633
        %v635 = vrot.slane %v552, %v634
        %v636 = vsel %vm599, %v635, %v631
        %v637 = vlaneseq
        %v638 = vshrl.u32 %v637, 7
        %v639 = vsub.s32 %v589, %v638
        %v640 = vrot.slane %v555, %v639
        %v641 = vlaneseq
        %v642 = vshrl.u32 %v641, 7
        %v643 = vsub.s32 %v594, %v642
        %v644 = vrot.slane %v558, %v643
        %v645 = vsel %vm599, %v644, %v640
        %v646 = vlaneseq
        %v647 = vshrl.u32 %v646, 7
        %v648 = vsub.s32 %v589, %v647
        %v649 = vrot.slane %v561, %v648
        %v650 = vlaneseq
        %v651 = vshrl.u32 %v650, 7
        %v652 = vsub.s32 %v594, %v651
        %v653 = vrot.slane %v564, %v652
        %v654 = vsel %vm599, %v653, %v649
        %v655 = vlaneseq
        %v656 = vshrl.u32 %v655, 7
        %v657 = vsub.s32 %v589, %v656
        %v658 = vrot.slane %v567, %v657
        %v659 = vlaneseq
        %v660 = vshrl.u32 %v659, 7
        %v661 = vsub.s32 %v594, %v660
        %v662 = vrot.slane %v570, %v661
        %v663 = vsel %vm599, %v662, %v658
        %vm664 = vcmask 1041409
        %v665 = vsel %vm664, %v609, %v600
        %vm666 = vcmask 1042434
        %v667 = vsel %vm666, %v618, %v665
        %vm668 = vcmask 1043459
        %v669 = vsel %vm668, %v627, %v667
        %vm670 = vcmask 1044484
        %v671 = vsel %vm670, %v636, %v669
        %vm672 = vcmask 1045509
        %v673 = vsel %vm672, %v645, %v671
        %vm674 = vcmask 1046534
        %v675 = vsel %vm674, %v654, %v673
        %vm676 = vcmask 1047559
        %v677 = vsel %vm676, %v663, %v675
        %v679 = vsel %vm571, %v677, -1e+30
        %vm680 = vcmask 130048
        %v681 = vsel %vm680, %v679, -inf
        %682 = vmax.xlane.f32.xlu0 %v681
        %v683 = vpop.xlane.xlu0 %682
        %vm684 = vcmp.le.f32.partialorder %v683, -5e+29
        %v685 = vsel %vm684, 0.0, %v683
        %v687 = vlaneseq
        %v688 = vshrl.u32 %v687, 7
        %v689 = vsub.s32 0, %v688
        %v690 = vrot.slane %v685, %v689
        %v691 = vlaneseq
        %v692 = vshrl.u32 %v691, 7
        %v693 = vsub.s32 1, %v692
        %v694 = vrot.slane %v685, %v693
        %v695 = vlaneseq
        %v696 = vshrl.u32 %v695, 7
        %v697 = vsub.s32 2, %v696
        %v698 = vrot.slane %v685, %v697
        %v699 = vlaneseq
        %v700 = vshrl.u32 %v699, 7
        %v701 = vsub.s32 3, %v700
        %v702 = vrot.slane %v685, %v701
        %v703 = vlaneseq
        %v704 = vshrl.u32 %v703, 7
        %v705 = vsub.s32 4, %v704
        %v706 = vrot.slane %v685, %v705
        %v707 = vlaneseq
        %v708 = vshrl.u32 %v707, 7
        %v709 = vsub.s32 5, %v708
        %v710 = vrot.slane %v685, %v709
        %v711 = vlaneseq
        %v712 = vshrl.u32 %v711, 7
        %v713 = vsub.s32 6, %v712
        %v714 = vrot.slane %v685, %v713
        %v715 = vlaneseq
        %v716 = vshrl.u32 %v715, 7
        %v717 = vsub.s32 7, %v716
        %v718 = vrot.slane %v685, %v717
        %v727 = vsub.f32 %v525, %v690
        %v728 = vsub.f32 %v528, %v690
        %v729 = vsub.f32 %v531, %v694
        %v730 = vsub.f32 %v534, %v694
        %v731 = vsub.f32 %v537, %v698
        %v732 = vsub.f32 %v540, %v698
        %v733 = vsub.f32 %v543, %v702
        %v734 = vsub.f32 %v546, %v702
        %v735 = vsub.f32 %v549, %v706
        %v736 = vsub.f32 %v552, %v706
        %v737 = vsub.f32 %v555, %v710
        %v738 = vsub.f32 %v558, %v710
        %v739 = vsub.f32 %v561, %v714
        %v740 = vsub.f32 %v564, %v714
        %v741 = vsub.f32 %v567, %v718
        %v742 = vsub.f32 %v570, %v718
        %v743 = vmul.f32 %v727, 1.442695
        %v744 = vpow.pop %v743
        %v745 = vmul.f32 %v728, 1.442695
        %v746 = vpow.pop %v745
        %v747 = vmul.f32 %v729, 1.442695
        %v748 = vpow.pop %v747
        %v749 = vmul.f32 %v730, 1.442695
        %v750 = vpow.pop %v749
        %v751 = vmul.f32 %v731, 1.442695
        %v752 = vpow.pop %v751
        %v753 = vmul.f32 %v732, 1.442695
        %v754 = vpow.pop %v753
        %v755 = vmul.f32 %v733, 1.442695
        %v756 = vpow.pop %v755
        %v757 = vmul.f32 %v734, 1.442695
        %v758 = vpow.pop %v757
        %v759 = vmul.f32 %v735, 1.442695
        %v760 = vpow.pop %v759
        %v761 = vmul.f32 %v736, 1.442695
        %v762 = vpow.pop %v761
        %v763 = vmul.f32 %v737, 1.442695
        %v764 = vpow.pop %v763
        %v765 = vmul.f32 %v738, 1.442695
        %v766 = vpow.pop %v765
        %v767 = vmul.f32 %v739, 1.442695
        %v768 = vpow.pop %v767
        %v769 = vmul.f32 %v740, 1.442695
        %v770 = vpow.pop %v769
        %v771 = vmul.f32 %v741, 1.442695
        %v772 = vpow.pop %v771
        %v773 = vmul.f32 %v742, 1.442695
        %v774 = vpow.pop %v773
        %v776 = vlaneseq
        %v777 = vshrl.u32 %v776, 7
        %v778 = vsub.s32 0, %v777
        %v779 = vrot.slane %v278, %v778
        %781 = vbcast.lane.b32.xlu0 %v779, 256
        %v782 = vpop.permute.xlu0 %781
        %s784 = sor.u32 256, 8
        %785 = vbcast.lane.b32.xlu0 %v779, %s784
        %v786 = vpop.permute.xlu0 %785
        %v787 = vlaneseq
        %v788 = vshrl.u32 %v787, 7
        %v789 = vsub.s32 1, %v788
        %v790 = vrot.slane %v278, %v789
        %792 = vbcast.lane.b32.xlu0 %v790, 256
        %v793 = vpop.permute.xlu0 %792
        %s795 = sor.u32 256, 8
        %796 = vbcast.lane.b32.xlu0 %v790, %s795
        %v797 = vpop.permute.xlu0 %796
        %v798 = vlaneseq
        %v799 = vshrl.u32 %v798, 7
        %v800 = vsub.s32 2, %v799
        %v801 = vrot.slane %v278, %v800
        %803 = vbcast.lane.b32.xlu0 %v801, 256
        %v804 = vpop.permute.xlu0 %803
        %s806 = sor.u32 256, 8
        %807 = vbcast.lane.b32.xlu0 %v801, %s806
        %v808 = vpop.permute.xlu0 %807
        %v809 = vlaneseq
        %v810 = vshrl.u32 %v809, 7
        %v811 = vsub.s32 3, %v810
        %v812 = vrot.slane %v278, %v811
        %814 = vbcast.lane.b32.xlu0 %v812, 256
        %v815 = vpop.permute.xlu0 %814
        %s817 = sor.u32 256, 8
        %818 = vbcast.lane.b32.xlu0 %v812, %s817
        %v819 = vpop.permute.xlu0 %818
        %v820 = vlaneseq
        %v821 = vshrl.u32 %v820, 7
        %v822 = vsub.s32 4, %v821
        %v823 = vrot.slane %v278, %v822
        %825 = vbcast.lane.b32.xlu0 %v823, 256
        %v826 = vpop.permute.xlu0 %825
        %s828 = sor.u32 256, 8
        %829 = vbcast.lane.b32.xlu0 %v823, %s828
        %v830 = vpop.permute.xlu0 %829
        %v831 = vlaneseq
        %v832 = vshrl.u32 %v831, 7
        %v833 = vsub.s32 5, %v832
        %v834 = vrot.slane %v278, %v833
        %836 = vbcast.lane.b32.xlu0 %v834, 256
        %v837 = vpop.permute.xlu0 %836
        %s839 = sor.u32 256, 8
        %840 = vbcast.lane.b32.xlu0 %v834, %s839
        %v841 = vpop.permute.xlu0 %840
        %v842 = vlaneseq
        %v843 = vshrl.u32 %v842, 7
        %v844 = vsub.s32 6, %v843
        %v845 = vrot.slane %v278, %v844
        %847 = vbcast.lane.b32.xlu0 %v845, 256
        %v848 = vpop.permute.xlu0 %847
        %s850 = sor.u32 256, 8
        %851 = vbcast.lane.b32.xlu0 %v845, %s850
        %v852 = vpop.permute.xlu0 %851
        %v853 = vlaneseq
        %v854 = vshrl.u32 %v853, 7
        %v855 = vsub.s32 7, %v854
        %v856 = vrot.slane %v278, %v855
        %858 = vbcast.lane.b32.xlu0 %v856, 256
        %v859 = vpop.permute.xlu0 %858
        %s861 = sor.u32 256, 8
        %862 = vbcast.lane.b32.xlu0 %v856, %s861
        %v863 = vpop.permute.xlu0 %862
        %v880 = vmul.f32 %v744, %v782
        %v881 = vmul.f32 %v746, %v786
        %v882 = vmul.f32 %v748, %v793
        %v883 = vmul.f32 %v750, %v797
        %v884 = vmul.f32 %v752, %v804
        %v885 = vmul.f32 %v754, %v808
        %v886 = vmul.f32 %v756, %v815
        %v887 = vmul.f32 %v758, %v819
        %v888 = vmul.f32 %v760, %v826
        %v889 = vmul.f32 %v762, %v830
        %v890 = vmul.f32 %v764, %v837
        %v891 = vmul.f32 %v766, %v841
        %v892 = vmul.f32 %v768, %v848
        %v893 = vmul.f32 %v770, %v852
        %v894 = vmul.f32 %v772, %v859
        %v895 = vmul.f32 %v774, %v863
        %912 = vset.pattern.permute.xlu0 0
        %913 = vperm.xlu0 %912, %v880
        %v914 = vpop.permute.xlu0 %913
        %915 = vset.pattern.permute.xlu0 0
        %916 = vperm.xlu0 %915, %v881
        %v917 = vpop.permute.xlu0 %916
        %918 = vset.pattern.permute.xlu0 0
        %919 = vperm.xlu0 %918, %v882
        %v920 = vpop.permute.xlu0 %919
        %921 = vset.pattern.permute.xlu0 0
        %922 = vperm.xlu0 %921, %v883
        %v923 = vpop.permute.xlu0 %922
        %924 = vset.pattern.permute.xlu0 0
        %925 = vperm.xlu0 %924, %v884
        %v926 = vpop.permute.xlu0 %925
        %927 = vset.pattern.permute.xlu0 0
        %928 = vperm.xlu0 %927, %v885
        %v929 = vpop.permute.xlu0 %928
        %930 = vset.pattern.permute.xlu0 0
        %931 = vperm.xlu0 %930, %v886
        %v932 = vpop.permute.xlu0 %931
        %933 = vset.pattern.permute.xlu0 0
        %934 = vperm.xlu0 %933, %v887
        %v935 = vpop.permute.xlu0 %934
        %936 = vset.pattern.permute.xlu0 0
        %937 = vperm.xlu0 %936, %v888
        %v938 = vpop.permute.xlu0 %937
        %939 = vset.pattern.permute.xlu0 0
        %940 = vperm.xlu0 %939, %v889
        %v941 = vpop.permute.xlu0 %940
        %942 = vset.pattern.permute.xlu0 0
        %943 = vperm.xlu0 %942, %v890
        %v944 = vpop.permute.xlu0 %943
        %945 = vset.pattern.permute.xlu0 0
        %946 = vperm.xlu0 %945, %v891
        %v947 = vpop.permute.xlu0 %946
        %948 = vset.pattern.permute.xlu0 0
        %949 = vperm.xlu0 %948, %v892
        %v950 = vpop.permute.xlu0 %949
        %951 = vset.pattern.permute.xlu0 0
        %952 = vperm.xlu0 %951, %v893
        %v953 = vpop.permute.xlu0 %952
        %954 = vset.pattern.permute.xlu0 0
        %955 = vperm.xlu0 %954, %v894
        %v956 = vpop.permute.xlu0 %955
        %957 = vset.pattern.permute.xlu0 0
        %958 = vperm.xlu0 %957, %v895
        %v959 = vpop.permute.xlu0 %958
        %v960 = vlaneseq
        %v961 = vshrl.u32 %v960, 7
        %v962 = vsub.s32 %v589, %v961
        %v963 = vrot.slane %v914, %v962
        %v964 = vlaneseq
        %v965 = vshrl.u32 %v964, 7
        %v966 = vsub.s32 %v594, %v965
        %v967 = vrot.slane %v917, %v966
        %v968 = vsel %vm599, %v967, %v963
        %v969 = vlaneseq
        %v970 = vshrl.u32 %v969, 7
        %v971 = vsub.s32 %v589, %v970
        %v972 = vrot.slane %v920, %v971
        %v973 = vlaneseq
        %v974 = vshrl.u32 %v973, 7
        %v975 = vsub.s32 %v594, %v974
        %v976 = vrot.slane %v923, %v975
        %v977 = vsel %vm599, %v976, %v972
        %v978 = vlaneseq
        %v979 = vshrl.u32 %v978, 7
        %v980 = vsub.s32 %v589, %v979
        %v981 = vrot.slane %v926, %v980
        %v982 = vlaneseq
        %v983 = vshrl.u32 %v982, 7
        %v984 = vsub.s32 %v594, %v983
        %v985 = vrot.slane %v929, %v984
        %v986 = vsel %vm599, %v985, %v981
        %v987 = vlaneseq
        %v988 = vshrl.u32 %v987, 7
        %v989 = vsub.s32 %v589, %v988
        %v990 = vrot.slane %v932, %v989
        %v991 = vlaneseq
        %v992 = vshrl.u32 %v991, 7
        %v993 = vsub.s32 %v594, %v992
        %v994 = vrot.slane %v935, %v993
        %v995 = vsel %vm599, %v994, %v990
        %v996 = vlaneseq
        %v997 = vshrl.u32 %v996, 7
        %v998 = vsub.s32 %v589, %v997
        %v999 = vrot.slane %v938, %v998
        %v1000 = vlaneseq
        %v1001 = vshrl.u32 %v1000, 7
        %v1002 = vsub.s32 %v594, %v1001
        %v1003 = vrot.slane %v941, %v1002
        %v1004 = vsel %vm599, %v1003, %v999
        %v1005 = vlaneseq
        %v1006 = vshrl.u32 %v1005, 7
        %v1007 = vsub.s32 %v589, %v1006
        %v1008 = vrot.slane %v944, %v1007
        %v1009 = vlaneseq
        %v1010 = vshrl.u32 %v1009, 7
        %v1011 = vsub.s32 %v594, %v1010
        %v1012 = vrot.slane %v947, %v1011
        %v1013 = vsel %vm599, %v1012, %v1008
        %v1014 = vlaneseq
        %v1015 = vshrl.u32 %v1014, 7
        %v1016 = vsub.s32 %v589, %v1015
        %v1017 = vrot.slane %v950, %v1016
        %v1018 = vlaneseq
        %v1019 = vshrl.u32 %v1018, 7
        %v1020 = vsub.s32 %v594, %v1019
        %v1021 = vrot.slane %v953, %v1020
        %v1022 = vsel %vm599, %v1021, %v1017
        %v1023 = vlaneseq
        %v1024 = vshrl.u32 %v1023, 7
        %v1025 = vsub.s32 %v589, %v1024
        %v1026 = vrot.slane %v956, %v1025
        %v1027 = vlaneseq
        %v1028 = vshrl.u32 %v1027, 7
        %v1029 = vsub.s32 %v594, %v1028
        %v1030 = vrot.slane %v959, %v1029
        %v1031 = vsel %vm599, %v1030, %v1026
        %v1032 = vsel %vm664, %v977, %v968
        %v1033 = vsel %vm666, %v986, %v1032
        %v1034 = vsel %vm668, %v995, %v1033
        %v1035 = vsel %vm670, %v1004, %v1034
        %v1036 = vsel %vm672, %v1013, %v1035
        %v1037 = vsel %vm674, %v1022, %v1036
        %v1038 = vsel %vm676, %v1031, %v1037
        %v1040 = vsel %vm680, %v1038, 0.0
        %1041 = vadd.xlane.f32.xlu0 %v1040
        %v1042 = vpop.xlane.xlu0 %1041
        %v1043 = vmax.f32 %v1042, 1e-30
        %v1044 = vrcp.pop %v1043
        %v1046 = vlaneseq
        %v1047 = vshrl.u32 %v1046, 7
        %v1048 = vsub.s32 0, %v1047
        %v1049 = vrot.slane %v1044, %v1048
        %v1050 = vlaneseq
        %v1051 = vshrl.u32 %v1050, 7
        %v1052 = vsub.s32 1, %v1051
        %v1053 = vrot.slane %v1044, %v1052
        %v1054 = vlaneseq
        %v1055 = vshrl.u32 %v1054, 7
        %v1056 = vsub.s32 2, %v1055
        %v1057 = vrot.slane %v1044, %v1056
        %v1058 = vlaneseq
        %v1059 = vshrl.u32 %v1058, 7
        %v1060 = vsub.s32 3, %v1059
        %v1061 = vrot.slane %v1044, %v1060
        %v1062 = vlaneseq
        %v1063 = vshrl.u32 %v1062, 7
        %v1064 = vsub.s32 4, %v1063
        %v1065 = vrot.slane %v1044, %v1064
        %v1066 = vlaneseq
        %v1067 = vshrl.u32 %v1066, 7
        %v1068 = vsub.s32 5, %v1067
        %v1069 = vrot.slane %v1044, %v1068
        %v1070 = vlaneseq
        %v1071 = vshrl.u32 %v1070, 7
        %v1072 = vsub.s32 6, %v1071
        %v1073 = vrot.slane %v1044, %v1072
        %v1074 = vlaneseq
        %v1075 = vshrl.u32 %v1074, 7
        %v1076 = vsub.s32 7, %v1075
        %v1077 = vrot.slane %v1044, %v1076
        %v1086 = vmul.f32 %v880, %v1049
        %v1087 = vmul.f32 %v881, %v1049
        %v1088 = vmul.f32 %v882, %v1053
        %v1089 = vmul.f32 %v883, %v1053
        %v1090 = vmul.f32 %v884, %v1057
        %v1091 = vmul.f32 %v885, %v1057
        %v1092 = vmul.f32 %v886, %v1061
        %v1093 = vmul.f32 %v887, %v1061
        %v1094 = vmul.f32 %v888, %v1065
        %v1095 = vmul.f32 %v889, %v1065
        %v1096 = vmul.f32 %v890, %v1069
        %v1097 = vmul.f32 %v891, %v1069
        %v1098 = vmul.f32 %v892, %v1073
        %v1099 = vmul.f32 %v893, %v1073
        %v1100 = vmul.f32 %v894, %v1077
        %v1101 = vmul.f32 %v895, %v1077
        %1103 = vset.pattern.permute.xlu0 0
        %1104 = vperm.xlu0 %1103, %v1086
        %v1105 = vpop.permute.xlu0 %1104
        %1108 = vset.pattern.permute.xlu0 0
        %1109 = vperm.xlu0 %1108, %v1087
        %v1110 = vpop.permute.xlu0 %1109
        %1113 = vset.pattern.permute.xlu0 0
        %1114 = vperm.xlu0 %1113, %v1088
        %v1115 = vpop.permute.xlu0 %1114
        %1118 = vset.pattern.permute.xlu0 0
        %1119 = vperm.xlu0 %1118, %v1089
        %v1120 = vpop.permute.xlu0 %1119
        %1123 = vset.pattern.permute.xlu0 0
        %1124 = vperm.xlu0 %1123, %v1090
        %v1125 = vpop.permute.xlu0 %1124
        %1128 = vset.pattern.permute.xlu0 0
        %1129 = vperm.xlu0 %1128, %v1091
        %v1130 = vpop.permute.xlu0 %1129
        %1133 = vset.pattern.permute.xlu0 0
        %1134 = vperm.xlu0 %1133, %v1092
        %v1135 = vpop.permute.xlu0 %1134
        %1138 = vset.pattern.permute.xlu0 0
        %1139 = vperm.xlu0 %1138, %v1093
        %v1140 = vpop.permute.xlu0 %1139
        %1143 = vset.pattern.permute.xlu0 0
        %1144 = vperm.xlu0 %1143, %v1094
        %v1145 = vpop.permute.xlu0 %1144
        %1148 = vset.pattern.permute.xlu0 0
        %1149 = vperm.xlu0 %1148, %v1095
        %v1150 = vpop.permute.xlu0 %1149
        %1153 = vset.pattern.permute.xlu0 0
        %1154 = vperm.xlu0 %1153, %v1096
        %v1155 = vpop.permute.xlu0 %1154
        %1158 = vset.pattern.permute.xlu0 0
        %1159 = vperm.xlu0 %1158, %v1097
        %v1160 = vpop.permute.xlu0 %1159
        %1163 = vset.pattern.permute.xlu0 0
        %1164 = vperm.xlu0 %1163, %v1098
        %v1165 = vpop.permute.xlu0 %1164
        %1168 = vset.pattern.permute.xlu0 0
        %1169 = vperm.xlu0 %1168, %v1099
        %v1170 = vpop.permute.xlu0 %1169
        %1173 = vset.pattern.permute.xlu0 0
        %1174 = vperm.xlu0 %1173, %v1100
        %v1175 = vpop.permute.xlu0 %1174
        %1178 = vset.pattern.permute.xlu0 0
        %1179 = vperm.xlu0 %1178, %v1101
        %v1180 = vpop.permute.xlu0 %1179
        %v1182 = vmul.f32 %v1105, %v262
        %v1183 = vmul.f32 %v1110, %v263
        %v1184 = vmul.f32 %v1115, %v264
        %v1185 = vmul.f32 %v1120, %v265
        %v1186 = vmul.f32 %v1125, %v266
        %v1187 = vmul.f32 %v1130, %v267
        %v1188 = vmul.f32 %v1135, %v268
        %v1189 = vmul.f32 %v1140, %v269
        %v1190 = vmul.f32 %v1145, %v270
        %v1191 = vmul.f32 %v1150, %v271
        %v1192 = vmul.f32 %v1155, %v272
        %v1193 = vmul.f32 %v1160, %v273
        %v1194 = vmul.f32 %v1165, %v274
        %v1195 = vmul.f32 %v1170, %v275
        %v1196 = vmul.f32 %v1175, %v276
        %v1197 = vmul.f32 %v1180, %v277
        %v1198 = vsel %vm290, %v1182, 0.0
        %v1199 = vsel %vm290, %v1183, 0.0
        %v1200 = vadd.f32 %v1198, %v1199
        %v1201 = vrot.slane %v1200, 4
        %v1202 = vadd.f32 %v1200, %v1201
        %v1203 = vrot.slane %v1202, 2
        %v1204 = vadd.f32 %v1202, %v1203
        %v1205 = vrot.slane %v1204, 1
        %v1206 = vadd.f32 %v1204, %v1205
        %v1207 = vsel %vm290, %v1184, 0.0
        %v1208 = vsel %vm290, %v1185, 0.0
        %v1209 = vadd.f32 %v1207, %v1208
        %v1210 = vrot.slane %v1209, 4
        %v1211 = vadd.f32 %v1209, %v1210
        %v1212 = vrot.slane %v1211, 2
        %v1213 = vadd.f32 %v1211, %v1212
        %v1214 = vrot.slane %v1213, 1
        %v1215 = vadd.f32 %v1213, %v1214
        %v1216 = vsel %vm290, %v1186, 0.0
        %v1217 = vsel %vm290, %v1187, 0.0
        %v1218 = vadd.f32 %v1216, %v1217
        %v1219 = vrot.slane %v1218, 4
        %v1220 = vadd.f32 %v1218, %v1219
        %v1221 = vrot.slane %v1220, 2
        %v1222 = vadd.f32 %v1220, %v1221
        %v1223 = vrot.slane %v1222, 1
        %v1224 = vadd.f32 %v1222, %v1223
        %v1225 = vsel %vm290, %v1188, 0.0
        %v1226 = vsel %vm290, %v1189, 0.0
        %v1227 = vadd.f32 %v1225, %v1226
        %v1228 = vrot.slane %v1227, 4
        %v1229 = vadd.f32 %v1227, %v1228
        %v1230 = vrot.slane %v1229, 2
        %v1231 = vadd.f32 %v1229, %v1230
        %v1232 = vrot.slane %v1231, 1
        %v1233 = vadd.f32 %v1231, %v1232
        %v1234 = vsel %vm290, %v1190, 0.0
        %v1235 = vsel %vm290, %v1191, 0.0
        %v1236 = vadd.f32 %v1234, %v1235
        %v1237 = vrot.slane %v1236, 4
        %v1238 = vadd.f32 %v1236, %v1237
        %v1239 = vrot.slane %v1238, 2
        %v1240 = vadd.f32 %v1238, %v1239
        %v1241 = vrot.slane %v1240, 1
        %v1242 = vadd.f32 %v1240, %v1241
        %v1243 = vsel %vm290, %v1192, 0.0
        %v1244 = vsel %vm290, %v1193, 0.0
        %v1245 = vadd.f32 %v1243, %v1244
        %v1246 = vrot.slane %v1245, 4
        %v1247 = vadd.f32 %v1245, %v1246
        %v1248 = vrot.slane %v1247, 2
        %v1249 = vadd.f32 %v1247, %v1248
        %v1250 = vrot.slane %v1249, 1
        %v1251 = vadd.f32 %v1249, %v1250
        %v1252 = vsel %vm290, %v1194, 0.0
        %v1253 = vsel %vm290, %v1195, 0.0
        %v1254 = vadd.f32 %v1252, %v1253
        %v1255 = vrot.slane %v1254, 4
        %v1256 = vadd.f32 %v1254, %v1255
        %v1257 = vrot.slane %v1256, 2
        %v1258 = vadd.f32 %v1256, %v1257
        %v1259 = vrot.slane %v1258, 1
        %v1260 = vadd.f32 %v1258, %v1259
        %v1261 = vsel %vm290, %v1196, 0.0
        %v1262 = vsel %vm290, %v1197, 0.0
        %v1263 = vadd.f32 %v1261, %v1262
        %v1264 = vrot.slane %v1263, 4
        %v1265 = vadd.f32 %v1263, %v1264
        %v1266 = vrot.slane %v1265, 2
        %v1267 = vadd.f32 %v1265, %v1266
        %v1268 = vrot.slane %v1267, 1
        %v1269 = vadd.f32 %v1267, %v1268
        %v1278 = vsel %vm664, %v1215, %v1206
        %v1279 = vsel %vm666, %v1224, %v1278
        %v1280 = vsel %vm668, %v1233, %v1279
        %v1281 = vsel %vm670, %v1242, %v1280
        %v1282 = vsel %vm672, %v1251, %v1281
        %v1283 = vsel %vm674, %v1260, %v1282
        %v1284 = vsel %vm676, %v1269, %v1283
        %1286 = vst.msk [vmem:[%s256] sm:$0xff] %vm290, %v1284
        %s1287 = sand.u32 %s145, 1
        %s1288 = scalar_lea.sflag [#allocation4], %s1287
        %s1289 = sand.u32 %s145, 1
        %s1290 = smul.addr %s1289, 8
        %s1291 = scalar_lea.vmem [#allocation5], %s1290
        // Predicated region
        $region45: #{tpu_custom_call.1} parent=39 // pred_check
          %p1292 = pneg %p155
        $region46: #{tpu_custom_call.1} parent=39 // pred_check_branch
          %1294 = sbr.rel (%p1292) target = $region48
        $region47: #{tpu_custom_call.1} parent=39 // pred_region
          %s1296 = ssub.s32 128, 128
          %1297 = vsyncadd %s1288, %s1296
          %s1298 = smul.addr %s22, 128
          %s1299 = scalar_lea.hbm %s5, %s1298
          %s1301 = sshll.u32 %s1291, 4
          %s1302 = int_to_ptr.vmem [resolvable:$true] %s1301
          %1304 = dma.vmem_to_hbm [thread:$0]  %s1302, 128, %s1299, %s1288
        $region48: #{tpu_custom_call.1} parent=39 // pred_fallthru
          _
      $region40: #{tpu_custom_call.1} parent=5 // pred_fallthru
        _
      %p1305 = scmp.le.s32.totalorder 2, %s17
      // Predicated region
      $region49: #{tpu_custom_call.1} parent=5 // pred_check
        %p1306 = pneg %p1305
      $region50: #{tpu_custom_call.1} parent=5 // pred_check_branch
        %1308 = sbr.rel (%p1306) target = $region52
      $region51: #{tpu_custom_call.1} parent=5 // pred_region
        %s1309 = ssub.s32 %s17, 2
        // Predicated region
        $region53: #{tpu_custom_call.1} parent=51 // pred_check
          %p1310 = pneg %p161
        $region54: #{tpu_custom_call.1} parent=51 // pred_check_branch
          %1312 = sbr.rel (%p1310) target = $region56
        $region55: #{tpu_custom_call.1} parent=51 // pred_region
          %s1313 = sand.u32 %s146, 1
          %s1314 = scalar_lea.sflag [#allocation4], %s1313
          %s1315 = sand.u32 %s146, 1
          %s1316 = smul.addr %s1315, 8
          %s1317 = scalar_lea.vmem [#allocation5], %s1316
          %1318 = dma.done %s1314, 128
        $region56: #{tpu_custom_call.1} parent=51 // pred_fallthru
          _
      $region52: #{tpu_custom_call.1} parent=5 // pred_fallthru
        _
    $region6: #{tpu_custom_call.1} parent=1 // loop_footer
      %s21 = sadd.s32 1, %s17
    $region7: #{tpu_custom_call.1} parent=1 // loop_footer_branch
      %16 = sbr.rel target = $region3
    $region8: #{tpu_custom_call.1} parent=1 // loop_exit
      _
    %1319 = vsyncpa [#allocation3], 1
    %s1320 = scalar_lea.sflag [#allocation3], 1
    %1321 = vsyncpa %s1320, 1
    %1322 = vsyncpa [#allocation4], 1
    %s1323 = scalar_lea.sflag [#allocation4], 1
    %1324 = vsyncpa %s1323, 1

</llo_original>
